<compile_context>
chip_gen: v7x
topology: tpu7x:2x2x1
jax: 0.10.0
libtpu: 0.0.40
codegen_flags: <defaults>
</compile_context>

<pallas_src>
import functools

import jax
import jax.numpy as jnp
from jax.experimental import pallas as pl
from jax.experimental.pallas import tpu as pltpu

_LANES = 512            # lane-dense last dim (multiple of 128)
_MAX_BLOCK_ROWS = 512   # (512, 512) f32 block = 1 MiB/array; worst case 5 arrays
                        # x 2 bufs = 10 MiB < v5e's 16 MiB scoped-VMEM default
_MIN_GRID = 4           # >=2 shards across v7x's 2 TCs; >=4 keeps the DMA pipeline busy


def _fresh_kernel(x_ref, sign_ref, out_ref, acc_ref, *, buf_max, buf_half, acc_init):
    # TODO(synk): assumes x is exactly {0,1} rate-coded bits (as the torch module does).
    x = x_ref[...].astype(jnp.float32)                        # rate-coded bits {0,1}
    acc = jnp.clip(acc_init + (2.0 * x - 1.0), 0.0, buf_max)  # btype=float counter update
    sign = jnp.where(acc >= buf_half, 0.0, 1.0)               # 1 - ge()
    out = jnp.abs(sign - x)                                   # XOR of {0,1} bits
    sign_ref[...] = sign.astype(sign_ref.dtype)
    out_ref[...] = out.astype(out_ref.dtype)
    acc_ref[...] = acc.astype(acc_ref.dtype)


def _stateful_kernel(x_ref, acc_in_ref, sign_ref, out_ref, acc_ref, *, buf_max, buf_half):
    x = x_ref[...].astype(jnp.float32)
    acc = jnp.clip(acc_in_ref[...].astype(jnp.float32) + (2.0 * x - 1.0), 0.0, buf_max)
    sign = jnp.where(acc >= buf_half, 0.0, 1.0)
    out = jnp.abs(sign - x)
    sign_ref[...] = sign.astype(sign_ref.dtype)
    out_ref[...] = out.astype(out_ref.dtype)
    acc_ref[...] = acc.astype(acc_ref.dtype)


def _tile_geometry(n):
    """rows (multiple of 8), block_rows, grid for a lane-dense (rows, _LANES) slab."""
    rows = pl.cdiv(n, _LANES)
    rows = ((rows + 7) // 8) * 8                 # (8, 128) tiling constraint only
    # Target >= _MIN_GRID grid steps (v7x 2-TC sharding + pipelining), never below
    # 8 rows per block, never above the v5e-safe cap.
    block_rows = min(_MAX_BLOCK_ROWS,
                     max(8, ((pl.cdiv(rows, _MIN_GRID) + 7) // 8) * 8))
    grid = pl.cdiv(rows, block_rows)             # ragged final block is masked by Pallas
    return rows, block_rows, grid


def _to_slab(flat, rows, n, dtype=None):
    if dtype is not None and flat.dtype != jnp.dtype(dtype):
        flat = flat.astype(dtype)
    if rows * _LANES == n:                       # zero-copy fast path (reshape = metadata)
        return flat.reshape(rows, _LANES)
    return jnp.pad(flat, (0, rows * _LANES - n)).reshape(rows, _LANES)


def _from_slab(slab, n, shape):
    flat = slab.reshape(-1)
    if flat.size != n:
        flat = flat[:n]
    return flat.reshape(shape)


@functools.partial(jax.jit, static_argnames=("depth", "out_dtype", "acc_dtype"))
def _fsu_abs_cnt(x, acc_state, depth, out_dtype, acc_dtype):
    buf_max = float(2 ** depth - 1)
    buf_half = float(2 ** (depth - 1))
    acc_init = float(2 ** (depth - 1))

    orig_shape = x.shape
    n = x.size
    rows, block_rows, grid = _tile_geometry(n)

    x2 = _to_slab(x.reshape(-1), rows, n)        # keep caller dtype; widen in-kernel

    spec = pl.BlockSpec((block_rows, _LANES), lambda i: (i, 0))
    out_shapes = (
        jax.ShapeDtypeStruct((rows, _LANES), out_dtype),   # sign
        jax.ShapeDtypeStruct((rows, _LANES), out_dtype),   # output
        jax.ShapeDtypeStruct((rows, _LANES), acc_dtype),   # acc (persistent state, internal layout)
    )

    bytes_moved = (x2.dtype.itemsize
                   + 2 * jnp.dtype(out_dtype).itemsize
                   + jnp.dtype(acc_dtype).itemsize) * rows * _LANES

    if acc_state is None:
        kernel = functools.partial(_fresh_kernel, buf_max=buf_max,
                                   buf_half=buf_half, acc_init=acc_init)
        in_specs = [spec]
        operands = (x2,)
        io_aliases = {}
    else:
        kernel = functools.partial(_stateful_kernel, buf_max=buf_max, buf_half=buf_half)
        if acc_state.shape == (rows, _LANES):
            acc2 = acc_state.astype(acc_dtype)   # already internal layout: no repack copy
        else:
            acc2 = _to_slab(acc_state.reshape(-1), rows, n, dtype=acc_dtype)
        in_specs = [spec, spec]
        operands = (x2, acc2)
        io_aliases = {1: 2}                      # update acc state in place
        bytes_moved += acc2.dtype.itemsize * rows * _LANES

    sign2, out2, acc2_new = pl.pallas_call(
        kernel,
        out_shape=out_shapes,
        grid_spec=pltpu.PrefetchScalarGridSpec(
            num_scalar_prefetch=0,
            grid=(grid,),
            in_specs=in_specs,
            out_specs=[spec, spec, spec],
        ),
        input_output_aliases=io_aliases,
        compiler_params=pltpu.CompilerParams(
            dimension_semantics=("parallel",)),  # shards grid across 2 TCs on v7x
        cost_estimate=pl.CostEstimate(
            flops=8 * rows * _LANES, transcendentals=0, bytes_accessed=bytes_moved),
    )(*operands)

    sign = _from_slab(sign2, n, orig_shape)
    out = _from_slab(out2, n, orig_shape)
    return sign, out, acc2_new                   # acc kept in internal layout across steps


def fsu_abs_cnt(x, acc_state=None, depth=3, out_dtype=jnp.float32, acc_dtype=None):
    """FSUAbs counter-mode forward (shiftreg=False, interleave=False).

    Returns (sign, output, acc_state). `acc_state=None` reproduces a fresh torch
    module (acc buffer = 2**(depth-1)); feed the returned acc_state (kept in the
    kernel's internal lane-dense layout to avoid per-step repacking) back in for
    subsequent time steps. out_dtype defaults to float32 to match stype=torch.float;
    bfloat16 is bit-exact for the {0,1} outputs and halves write bandwidth.
    """
    out_dtype = jnp.dtype(out_dtype)
    if acc_dtype is None:
        # counter values 0..2**depth-1 are exactly representable in bf16 for depth <= 8
        acc_dtype = jnp.dtype(jnp.bfloat16) if depth <= 8 else jnp.dtype(jnp.float32)
    else:
        acc_dtype = jnp.dtype(acc_dtype)
    return _fsu_abs_cnt(x, acc_state, depth, out_dtype, acc_dtype)


def acc_state_to_dense(acc_state, shape, dtype=jnp.float32):
    """Materialize the persistent counter in the caller's shape (matches torch .acc)."""
    n = 1
    for d in shape:
        n *= d
    return acc_state.reshape(-1)[:n].reshape(shape).astype(dtype)


def _reference(x, acc, depth):
    buf_max = float(2 ** depth - 1)
    buf_half = float(2 ** (depth - 1))
    acc_new = jnp.clip(acc + (2.0 * x - 1.0), 0.0, buf_max)
    sign = 1 - (acc_new >= buf_half).astype(jnp.int32)
    out = jnp.bitwise_xor(sign, x.astype(jnp.int32))
    return sign.astype(jnp.float32), out.astype(jnp.float32), acc_new


if __name__ == "__main__":
    depth = 3

    def check(shape, key):
        k1, k2 = jax.random.split(key)
        # rate-coded unary bit streams, two consecutive time steps
        x0 = jax.random.bernoulli(k1, p=0.5, shape=shape).astype(jnp.float32)
        x1 = jax.random.bernoulli(k2, p=0.5, shape=shape).astype(jnp.float32)

        # step 0: fresh module state; step 1: carried acc_state (internal layout, aliased)
        sign0, out0, st0 = fsu_abs_cnt(x0, depth=depth)
        sign1, out1, st1 = fsu_abs_cnt(x1, st0, depth=depth)
        jax.block_until_ready((sign0, out0, st0, sign1, out1, st1))

        acc_fresh = jnp.full(shape, float(2 ** (depth - 1)), jnp.float32)
        s0r, o0r, a0r = _reference(x0, acc_fresh, depth)
        s1r, o1r, a1r = _reference(x1, a0r, depth)

        assert sign0.shape == shape and out0.shape == shape
        assert sign0.dtype == jnp.float32 and out0.dtype == jnp.float32
        assert bool(jnp.all(sign0 == s0r)) and bool(jnp.all(out0 == o0r))
        assert bool(jnp.all(acc_state_to_dense(st0, shape) == a0r))
        assert bool(jnp.all(sign1 == s1r)) and bool(jnp.all(out1 == o1r))
        assert bool(jnp.all(acc_state_to_dense(st1, shape) == a1r))

    key = jax.random.PRNGKey(0)
    k_a, k_b, k_c = jax.random.split(key, 3)
    check((2, 4, 16, 16), k_a)   # small NCHW, single-block path
    check((5, 8, 16, 32), k_b)   # aligned zero-copy path, multi-block grid w/ ragged last block
    check((3, 5, 7), k_c)        # unaligned size: small-tail pad path

    print("KERNEL_OK")
</pallas_src>

<mosaic_0001>
module attributes {stable_mosaic.version = 11 : i64} {
  func.func @_fresh_kernel(%arg0: i32, %arg1: memref<8x512xf32, #tpu.memory_space<vmem>>, %arg2: memref<8x512xf32, #tpu.memory_space<vmem>>, %arg3: memref<8x512xf32, #tpu.memory_space<vmem>>, %arg4: memref<8x512xbf16, #tpu.memory_space<vmem>>) attributes {dimension_semantics = [#tpu.dimension_semantics<parallel>], iteration_bounds = array<i64: 1>, scalar_prefetch = 0 : i64, scratch_operands = 0 : i64, tpu.core_type = #tpu.core_type<tc>, window_params = [{transform_indices = @transform_0, window_bounds = array<i64: 8, 512>}, {transform_indices = @transform_1, window_bounds = array<i64: 8, 512>}, {transform_indices = @transform_2, window_bounds = array<i64: 8, 512>}, {transform_indices = @transform_3, window_bounds = array<i64: 8, 512>}]} {
    %c0 = arith.constant 0 : index
    %c0_0 = arith.constant 0 : index
    %0 = vector.load %arg1[%c0, %c0_0] : memref<8x512xf32, #tpu.memory_space<vmem>>, vector<8x512xf32>
    %cst = arith.constant 2.000000e+00 : f32
    %1 = vector.broadcast %cst : f32 to vector<8x512xf32>
    %2 = arith.mulf %1, %0 : vector<8x512xf32>
    %cst_1 = arith.constant 1.000000e+00 : f32
    %3 = vector.broadcast %cst_1 : f32 to vector<8x512xf32>
    %4 = arith.subf %2, %3 : vector<8x512xf32>
    %cst_2 = arith.constant 4.000000e+00 : f32
    %5 = vector.broadcast %cst_2 : f32 to vector<8x512xf32>
    %6 = arith.addf %5, %4 : vector<8x512xf32>
    %cst_3 = arith.constant 0.000000e+00 : f32
    %cst_4 = arith.constant 7.000000e+00 : f32
    %7 = vector.broadcast %cst_3 : f32 to vector<8x512xf32>
    %8 = arith.maximumf %7, %6 : vector<8x512xf32>
    %9 = vector.broadcast %cst_4 : f32 to vector<8x512xf32>
    %10 = arith.minimumf %9, %8 : vector<8x512xf32>
    %cst_5 = arith.constant 4.000000e+00 : f32
    %11 = vector.broadcast %cst_5 : f32 to vector<8x512xf32>
    %12 = arith.cmpf oge, %10, %11 : vector<8x512xf32>
    %cst_6 = arith.constant 0.000000e+00 : f32
    %cst_7 = arith.constant 1.000000e+00 : f32
    %13 = vector.broadcast %cst_6 : f32 to vector<8x512xf32>
    %14 = vector.broadcast %cst_7 : f32 to vector<8x512xf32>
    %15 = arith.select %12, %13, %14 : vector<8x512xi1>, vector<8x512xf32>
    %16 = arith.subf %15, %0 : vector<8x512xf32>
    %17 = math.absf %16 : vector<8x512xf32>
    %c0_8 = arith.constant 0 : index
    %c0_9 = arith.constant 0 : index
    %18 = vector.load %arg2[%c0_8, %c0_9] : memref<8x512xf32, #tpu.memory_space<vmem>>, vector<8x512xf32>
    tpu.vector_store %arg2[%c0_8, %c0_9], %15 {strides = array<i32>} : memref<8x512xf32, #tpu.memory_space<vmem>>, vector<8x512xf32>,
    %c0_10 = arith.constant 0 : index
    %c0_11 = arith.constant 0 : index
    %19 = vector.load %arg3[%c0_10, %c0_11] : memref<8x512xf32, #tpu.memory_space<vmem>>, vector<8x512xf32>
    tpu.vector_store %arg3[%c0_10, %c0_11], %17 {strides = array<i32>} : memref<8x512xf32, #tpu.memory_space<vmem>>, vector<8x512xf32>,
    %20 = arith.truncf %10 : vector<8x512xf32> to vector<8x512xbf16>
    %c0_12 = arith.constant 0 : index
    %c0_13 = arith.constant 0 : index
    %21 = vector.load %arg4[%c0_12, %c0_13] : memref<8x512xbf16, #tpu.memory_space<vmem>>, vector<8x512xbf16>
    tpu.vector_store %arg4[%c0_12, %c0_13], %20 {strides = array<i32>} : memref<8x512xbf16, #tpu.memory_space<vmem>>, vector<8x512xbf16>,
    return
  }
  func.func @transform_0(%arg0: i32) -> (i32, i32) {
    %c0_i32 = arith.constant 0 : i32
    %c0_i32_0 = arith.constant 0 : i32
    return %arg0, %c0_i32 : i32, i32
  }
  func.func @transform_1(%arg0: i32) -> (i32, i32) {
    %c0_i32 = arith.constant 0 : i32
    %c0_i32_0 = arith.constant 0 : i32
    return %arg0, %c0_i32 : i32, i32
  }
  func.func @transform_2(%arg0: i32) -> (i32, i32) {
    %c0_i32 = arith.constant 0 : i32
    %c0_i32_0 = arith.constant 0 : i32
    return %arg0, %c0_i32 : i32, i32
  }
  func.func @transform_3(%arg0: i32) -> (i32, i32) {
    %c0_i32 = arith.constant 0 : i32
    %c0_i32_0 = arith.constant 0 : i32
    return %arg0, %c0_i32 : i32, i32
  }
}

</mosaic_0001>

<llo_original>
// kernel: _fsu_abs_cnt.1
$region0: #{_fsu_abs_cnt.1}
  #allocation0 [shape = 'u32[]', space=smem, size = 0x4, offset = 0x4, fixed_abs, tag = 'smem constant byte address 0x4 - core index']
  #allocation1 [shape = 'u32[144,128]{1,0:T(1,128)}', space=vmem, size = 0x12000, scoped, tag = 'internal scratch']
  %s0 = inlined_call_operand.vmem [shape: f32[8,512], index: 0, kind: input, shape index: {}]
  %s1 = inlined_call_operand.vmem [shape: f32[8,512], index: 1, kind: output, shape index: {0}]
  %s2 = inlined_call_operand.vmem [shape: f32[8,512], index: 2, kind: output, shape index: {1}]
  %s3 = inlined_call_operand.hbm [shape: bf16[8,512], index: 3, kind: output, shape index: {2}]
  %4 = xla_tuple %s1, %s2, %s3
  %s5 = sld [smem:[#allocation0]]
  $region30: #{_fsu_abs_cnt.1} parent=0
    _
  %s7 = ssub.s32 1, %s5
  %s8 = scalar_select 0, %s7, %s5
  $region1: #{_fsu_abs_cnt.1} parent=0
    #allocation2 [shape = 'u8[8192]{0}', space=vmem, size = 0x2000, scoped, tag = 'output window, operand 2, single buffered']
    #allocation3 [shape = 's32[1]{0}', space=sflag, size = 0x4, scoped, tag = 'scoped memory for _fsu_abs_cnt.1']
    %9 = vsyncpa [#allocation3], 0
    // Predicated region
    $region2: #{_fsu_abs_cnt.1} parent=1 // pred_check
      _
    $region3: #{_fsu_abs_cnt.1} parent=1 // pred_check_branch
      %11 = sbr.rel (0) target = $region5
    $region4: #{_fsu_abs_cnt.1} parent=1 // pred_region
      _
    $region5: #{_fsu_abs_cnt.1} parent=1 // pred_fallthru
      _
    %v12 = vld [vmem:[%s0] sm:$0xff]
    %v13 = vld [vmem:[%s0 + $0x8] sm:$0xff]
    %v14 = vld [vmem:[%s0 + $0x10] sm:$0xff]
    %v15 = vld [vmem:[%s0 + $0x18] sm:$0xff]
    %v16 = vmul.f32 %v12, 2.0
    %v17 = vmul.f32 %v13, 2.0
    %v18 = vmul.f32 %v14, 2.0
    %v19 = vmul.f32 %v15, 2.0
    %v20 = vsub.f32 %v16, 1.0
    %v21 = vsub.f32 %v17, 1.0
    %v22 = vsub.f32 %v18, 1.0
    %v23 = vsub.f32 %v19, 1.0
    %v24 = vadd.f32 %v20, 4.0
    %v25 = vadd.f32 %v21, 4.0
    %v26 = vadd.f32 %v22, 4.0
    %v27 = vadd.f32 %v23, 4.0
    %v28 = vmax.f32 %v24, 0.0
    %v29 = vmax.f32 %v25, 0.0
    %v30 = vmax.f32 %v26, 0.0
    %v31 = vmax.f32 %v27, 0.0
    %v32 = vmin.f32 %v28, 7.0
    %v33 = vmin.f32 %v29, 7.0
    %v34 = vmin.f32 %v30, 7.0
    %v35 = vmin.f32 %v31, 7.0
    %vm36 = vcmp.ge.f32.partialorder %v32, 4.0
    %vm37 = vcmp.ge.f32.partialorder %v33, 4.0
    %vm38 = vcmp.ge.f32.partialorder %v34, 4.0
    %vm39 = vcmp.ge.f32.partialorder %v35, 4.0
    %v40 = vsel %vm36, 0.0, 1.0
    %v41 = vsel %vm37, 0.0, 1.0
    %v42 = vsel %vm38, 0.0, 1.0
    %v43 = vsel %vm39, 0.0, 1.0
    %v44 = vsub.f32 %v40, %v12
    %v45 = vsub.f32 %v41, %v13
    %v46 = vsub.f32 %v42, %v14
    %v47 = vsub.f32 %v43, %v15
    %v48 = vand.u32 2147483647, %v44
    %v49 = vand.u32 2147483647, %v45
    %v50 = vand.u32 2147483647, %v46
    %v51 = vand.u32 2147483647, %v47
    %52 = vst [vmem:[%s1] sm:$0xff] %v40
    %53 = vst [vmem:[%s1 + $0x8] sm:$0xff] %v41
    %54 = vst [vmem:[%s1 + $0x10] sm:$0xff] %v42
    %55 = vst [vmem:[%s1 + $0x18] sm:$0xff] %v43
    %56 = vst [vmem:[%s2] sm:$0xff] %v48
    %57 = vst [vmem:[%s2 + $0x8] sm:$0xff] %v49
    %58 = vst [vmem:[%s2 + $0x10] sm:$0xff] %v50
    %59 = vst [vmem:[%s2 + $0x18] sm:$0xff] %v51
    %v60 = vpack.c.bf16 %v32, %v32
    %v61 = vpack.c.bf16 %v33, %v33
    %v62 = vpack.c.bf16 %v34, %v34
    %v63 = vpack.c.bf16 %v35, %v35
    %v68 = vunpack.c.l.b16 %v60
    %v69 = vunpack.c.l.b16 %v61
    %v70 = vunpack.c.l.b16 %v62
    %v71 = vunpack.c.l.b16 %v63
    %v72 = vpack.c.b16 %v69, %v68
    %v73 = vpack.c.b16 %v71, %v70
    %76 = vst [vmem:[#allocation2] sm:$0xff] %v72
    %77 = vst [vmem:[#allocation2 + $0x8] sm:$0xff] %v73
    // Predicated region
    $region6: #{_fsu_abs_cnt.1} parent=1 // pred_check
      _
    $region7: #{_fsu_abs_cnt.1} parent=1 // pred_check_branch
      %79 = sbr.rel (0) target = $region9
    $region8: #{_fsu_abs_cnt.1} parent=1 // pred_region
      _
    $region9: #{_fsu_abs_cnt.1} parent=1 // pred_fallthru
      _
    // Predicated region
    $region10: #{_fsu_abs_cnt.1} parent=1 // pred_check
      _
    $region11: #{_fsu_abs_cnt.1} parent=1 // pred_check_branch
      %81 = sbr.rel (0) target = $region13
    $region12: #{_fsu_abs_cnt.1} parent=1 // pred_region
      _
    $region13: #{_fsu_abs_cnt.1} parent=1 // pred_fallthru
      _
    // Predicated region
    $region14: #{_fsu_abs_cnt.1} parent=1 // pred_check
      _
    $region15: #{_fsu_abs_cnt.1} parent=1 // pred_check_branch
      %83 = sbr.rel (0) target = $region17
    $region16: #{_fsu_abs_cnt.1} parent=1 // pred_region
      %s85 = ssub.s32 256, 256
      %86 = vsyncadd [#allocation3], %s85
      %s88 = sshll.u32 [#allocation2], 4
      %s89 = int_to_ptr.vmem [resolvable:$true] %s88
      %91 = dma.vmem_to_hbm [thread:$0]  %s89, 256, %s3, [#allocation3]
    $region17: #{_fsu_abs_cnt.1} parent=1 // pred_fallthru
      _
    // Predicated region
    $region18: #{_fsu_abs_cnt.1} parent=1 // pred_check
      _
    $region19: #{_fsu_abs_cnt.1} parent=1 // pred_check_branch
      %93 = sbr.rel (0) target = $region21
    $region20: #{_fsu_abs_cnt.1} parent=1 // pred_region
      _
    $region21: #{_fsu_abs_cnt.1} parent=1 // pred_fallthru
      _
    // Predicated region
    $region22: #{_fsu_abs_cnt.1} parent=1 // pred_check
      _
    $region23: #{_fsu_abs_cnt.1} parent=1 // pred_check_branch
      %95 = sbr.rel (0) target = $region25
    $region24: #{_fsu_abs_cnt.1} parent=1 // pred_region
      _
    $region25: #{_fsu_abs_cnt.1} parent=1 // pred_fallthru
      _
    // Predicated region
    $region26: #{_fsu_abs_cnt.1} parent=1 // pred_check
      _
    $region27: #{_fsu_abs_cnt.1} parent=1 // pred_check_branch
      %97 = sbr.rel (0) target = $region29
    $region28: #{_fsu_abs_cnt.1} parent=1 // pred_region
      %98 = dma.done [#allocation3], 256
    $region29: #{_fsu_abs_cnt.1} parent=1 // pred_fallthru
      _
    %99 = vsyncpa [#allocation3], 1

</llo_original>
